<compile_context>
chip_gen: v6e
topology: v6e:2x2x1
jax: 0.10.0
libtpu: 0.0.40
codegen_flags: <defaults>
</compile_context>

<pallas_src>
import functools

import jax
import jax.numpy as jnp
from jax import lax
from jax.experimental import pallas as pl
from jax.experimental.pallas import tpu as pltpu


def _round_up(n, m):
    return (n + m - 1) // m * m


def _cdiv(a, b):
    return -(-a // b)


def _itemsize(dt):
    return 2 if dt == jnp.bfloat16 else 4


_MIB = 1024 * 1024


def _vmem_limit(need_bytes):
    # >= estimated need with headroom, never below the 32 MiB scoped default,
    # capped at 64 MiB so the request stays within a v7x-sized VMEM budget.
    return int(min(64 * _MIB, max(32 * _MIB, 1.5 * need_bytes + 2 * _MIB)))


# -----------------------------------------------------------------------------
# Generic tiled matmul + bias kernel (hoisted input projection).
# -----------------------------------------------------------------------------
def _matmul_bias_kernel(a_ref, b_ref, bias_ref, o_ref, acc_ref):
    @pl.when(pl.program_id(2) == 0)
    def _():
        acc_ref[...] = jnp.zeros_like(acc_ref)

    acc_ref[...] += jnp.dot(a_ref[...], b_ref[...],
                            preferred_element_type=jnp.float32)

    @pl.when(pl.program_id(2) == pl.num_programs(2) - 1)
    def _():
        o_ref[...] = (acc_ref[...] + bias_ref[...]).astype(o_ref.dtype)


def matmul_bias(a, b, bias, *, compute_dtype=jnp.bfloat16,
                out_dtype=jnp.float32, tm_max=512, tn_max=256, tk_max=256):
    """(M,K) @ (K,N) + bias(N,).  Pads to MXU tiles; returns (M, N) out_dtype.

    Tiles grow to 512x256x256 for large problems (mem-bound stages run near
    the HBM roofline at those sizes) and shrink automatically for small ones.
    """
    M, K = a.shape
    Kb, N = b.shape
    assert K == Kb
    tm = min(tm_max, _round_up(M, 8))
    tn = min(tn_max, _round_up(N, 128))
    tk = min(tk_max, _round_up(K, 128))
    Mp, Kp, Np = _round_up(M, tm), _round_up(K, tk), _round_up(N, tn)

    a_p = jnp.pad(a, ((0, Mp - M), (0, Kp - K))).astype(compute_dtype)
    b_p = jnp.pad(b, ((0, Kp - K), (0, Np - N))).astype(compute_dtype)
    bias_p = jnp.pad(bias.reshape(1, N), ((0, 0), (0, Np - N))).astype(jnp.float32)

    cb = _itemsize(compute_dtype)
    need = (2 * (tm * tk + tk * tn) * cb          # double-buffered A/B tiles
            + 2 * tm * tn * _itemsize(out_dtype)  # double-buffered out tile
            + tm * tn * 4                         # f32 accumulator scratch
            + 2 * tn * 4)                         # bias tile

    out = pl.pallas_call(
        _matmul_bias_kernel,
        out_shape=jax.ShapeDtypeStruct((Mp, Np), out_dtype),
        grid_spec=pltpu.PrefetchScalarGridSpec(
            num_scalar_prefetch=0,
            grid=(Mp // tm, Np // tn, Kp // tk),
            in_specs=[
                pl.BlockSpec((tm, tk), lambda i, j, k: (i, k)),
                pl.BlockSpec((tk, tn), lambda i, j, k: (k, j)),
                pl.BlockSpec((1, tn), lambda i, j, k: (0, j)),
            ],
            out_specs=pl.BlockSpec((tm, tn), lambda i, j, k: (i, j)),
            scratch_shapes=[pltpu.VMEM((tm, tn), jnp.float32)],
        ),
        compiler_params=pltpu.CompilerParams(
            dimension_semantics=("parallel", "parallel", "arbitrary"),
            vmem_limit_bytes=_vmem_limit(need)),
    )(a_p, b_p, bias_p)
    if (Mp, Np) == (M, N):
        return out
    return out[:M, :N]


# -----------------------------------------------------------------------------
# Fused sequential recurrence + FC head:
#   h_t = tanh(pre_x_t + h_{t-1} @ W_hh^T);   y_t = h_t @ W_fc^T + b_fc
# Grid = (batch_chunks [parallel], time_chunks [arbitrary / sequential]).
# -----------------------------------------------------------------------------
def _rnn_fused_kernel(px_ref, whh_ref, wfc_ref, bfc_ref, y_ref, h_ref, *,
                      unroll):
    # px_ref : (Tc, Bc, Hp)  pre-activations x@W_ih^T + b_ih + b_hh (bf16/f32)
    # whh_ref: (Hp, Hp)      W_hh^T (compute dtype, grid-invariant)
    # wfc_ref: (Hp, Op)      W_fc^T (compute dtype, grid-invariant)
    # bfc_ref: (1, Op)       b_fc   (f32)
    # y_ref  : (Tc, Bc, Op)  fused FC output (f32)
    # h_ref  : (Bc, Hp)      carried hidden state (compute dtype, VMEM scratch)
    @pl.when(pl.program_id(1) == 0)     # first time-chunk of this batch chunk
    def _():
        h_ref[...] = jnp.zeros_like(h_ref)

    bias = bfc_ref[...]                  # hoisted out of the serial loop

    def step(t, carry):
        pre = px_ref[t].astype(jnp.float32) + jnp.dot(
            h_ref[...], whh_ref[...], preferred_element_type=jnp.float32)
        h_new = jnp.tanh(pre)            # keep tanh/adds in f32 (v5e-safe)
        h_c = h_new.astype(h_ref.dtype)  # single cast feeds carry + FC matmul
        h_ref[...] = h_c
        y_ref[t] = (jnp.dot(h_c, wfc_ref[...],
                            preferred_element_type=jnp.float32)
                    + bias).astype(y_ref.dtype)
        return carry

    lax.fori_loop(0, px_ref.shape[0], step, 0, unroll=unroll)


def rnn_forward(x, w_ih, w_hh, b_ih, b_hh, w_fc, b_fc, *,
                time_chunk=32, max_batch_chunk=256,
                compute_dtype=jnp.bfloat16):
    """x: (seq, batch, input_size) f32.  Returns (seq*batch, output_size) f32."""
    S, B, In = x.shape
    H = w_hh.shape[0]
    O = w_fc.shape[0]

    Hp = _round_up(H, 128)               # lane-dense hidden dim
    Op = _round_up(O, 128)               # lane-dense FC output dim

    # Batch chunking: as few chunks as possible with Bc <= max_batch_chunk so
    # the per-step MXU matmul has the largest possible M; chunks are multiples
    # of 8 sublanes.  (On v7x, >=2 chunks lets megacore split the "parallel"
    # batch axis across its two TensorCores.)
    B8 = _round_up(B, 8)
    n_b = _cdiv(B8, max_batch_chunk)
    Bc = _round_up(_cdiv(B8, n_b), 8)
    Bp = n_b * Bc

    # Time chunking: many timesteps per grid step to amortize grid overhead.
    n_t = _cdiv(S, time_chunk)
    Tc = _cdiv(S, n_t)
    Sp = n_t * Tc

    px_dtype = compute_dtype if compute_dtype == jnp.bfloat16 else jnp.float32

    # --- stage 1: input projection, hoisted out of the serial loop -----------
    x_p = jnp.pad(x, ((0, Sp - S), (0, Bp - B), (0, 0)))          # (Sp, Bp, In)
    wih_t = jnp.pad(w_ih.T, ((0, 0), (0, Hp - H)))                # (In, Hp)
    b_rnn = jnp.pad(b_ih + b_hh, (0, Hp - H))                     # (Hp,)
    px = matmul_bias(x_p.reshape(Sp * Bp, In), wih_t, b_rnn,
                     compute_dtype=compute_dtype, out_dtype=px_dtype)
    px = px.reshape(Sp, Bp, Hp)                                   # already padded

    # --- stage 2: sequential recurrence fused with the FC head ---------------
    whh_t = jnp.pad(w_hh.T, ((0, Hp - H), (0, Hp - H))).astype(compute_dtype)
    wfc_t = jnp.pad(w_fc.T, ((0, Hp - H), (0, Op - O))).astype(compute_dtype)
    bfc_p = jnp.pad(b_fc, (0, Op - O)).reshape(1, Op).astype(jnp.float32)

    cb, pb = _itemsize(compute_dtype), _itemsize(px_dtype)
    need = (2 * Tc * Bc * Hp * pb        # px double buffer
            + 2 * Tc * Bc * Op * 4       # y double buffer (f32)
            + 2 * Hp * Hp * cb           # W_hh (double-buffered, invariant)
            + 2 * Hp * Op * cb           # W_fc
            + 2 * Op * 4                 # b_fc
            + Bc * Hp * cb)              # hidden-carry scratch

    kernel = functools.partial(_rnn_fused_kernel,
                               unroll=max(1, min(8, Tc)))   # partial unroll

    y = pl.pallas_call(
        kernel,
        out_shape=jax.ShapeDtypeStruct((Sp, Bp, Op), jnp.float32),
        grid_spec=pltpu.PrefetchScalarGridSpec(
            num_scalar_prefetch=0,
            grid=(Bp // Bc, Sp // Tc),         # batch outer, time MINOR
            in_specs=[
                pl.BlockSpec((Tc, Bc, Hp), lambda b, c: (c, b, 0)),   # pre_x
                pl.BlockSpec((Hp, Hp), lambda b, c: (0, 0)),          # W_hh^T
                pl.BlockSpec((Hp, Op), lambda b, c: (0, 0)),          # W_fc^T
                pl.BlockSpec((1, Op), lambda b, c: (0, 0)),           # b_fc
            ],
            out_specs=pl.BlockSpec((Tc, Bc, Op), lambda b, c: (c, b, 0)),
            scratch_shapes=[pltpu.VMEM((Bc, Hp), compute_dtype)],     # carry
        ),
        compiler_params=pltpu.CompilerParams(
            # batch chunks independent ("parallel", megacore on v7x);
            # time must stay sequential ("arbitrary") for the carried state.
            dimension_semantics=("parallel", "arbitrary"),
            vmem_limit_bytes=_vmem_limit(need),
        ),
    )(px, whh_t, wfc_t, bfc_p)

    # --- unpad & flatten exactly like PyTorch .view(-1, hidden) -> fc --------
    return y[:S, :B, :O].reshape(S * B, O)


def rnn_reference(x, w_ih, w_hh, b_ih, b_hh, w_fc, b_fc):
    """Pure-JAX f32 reference matching torch.nn.RNN + Linear semantics."""
    S, B, _ = x.shape
    H = w_hh.shape[0]

    def step(h, x_t):
        h_new = jnp.tanh(x_t @ w_ih.T + b_ih + h @ w_hh.T + b_hh)
        return h_new, h_new

    h0 = jnp.zeros((B, H), jnp.float32)
    _, outs = lax.scan(step, h0, x)               # (S, B, H)
    flat = outs.reshape(S * B, H)
    return flat @ w_fc.T + b_fc


if __name__ == "__main__":
    seq_len, batch, input_size, hidden_size, output_size = 8, 4, 16, 32, 8

    key = jax.random.PRNGKey(0)
    ks = jax.random.split(key, 7)
    bound = 1.0 / (hidden_size ** 0.5)

    x = jax.random.normal(ks[0], (seq_len, batch, input_size), jnp.float32)
    w_ih = jax.random.uniform(ks[1], (hidden_size, input_size), jnp.float32, -bound, bound)
    w_hh = jax.random.uniform(ks[2], (hidden_size, hidden_size), jnp.float32, -bound, bound)
    b_ih = jax.random.uniform(ks[3], (hidden_size,), jnp.float32, -bound, bound)
    b_hh = jax.random.uniform(ks[4], (hidden_size,), jnp.float32, -bound, bound)
    w_fc = jax.random.uniform(ks[5], (output_size, hidden_size), jnp.float32, -bound, bound)
    b_fc = jax.random.uniform(ks[6], (output_size,), jnp.float32, -bound, bound)

    ref = rnn_reference(x, w_ih, w_hh, b_ih, b_hh, w_fc, b_fc)

    # 1) strict structural/semantic check in full f32.
    out_f32 = rnn_forward(x, w_ih, w_hh, b_ih, b_hh, w_fc, b_fc,
                          compute_dtype=jnp.float32)
    out_f32 = jax.block_until_ready(out_f32)
    assert out_f32.shape == (seq_len * batch, output_size), out_f32.shape
    assert jnp.allclose(out_f32, ref, atol=1e-4, rtol=1e-4), \
        float(jnp.max(jnp.abs(out_f32 - ref)))

    # 2) performance default: bf16 operands on the MXU, f32 accumulation.
    #    (bf16 recurrence error compounds over timesteps; re-validate at long
    #    target sequence lengths or keep compute_dtype=f32 there.)
    out_bf16 = rnn_forward(x, w_ih, w_hh, b_ih, b_hh, w_fc, b_fc)
    out_bf16 = jax.block_until_ready(out_bf16)
    assert out_bf16.shape == (seq_len * batch, output_size), out_bf16.shape
    assert jnp.allclose(out_bf16, ref, atol=5e-2, rtol=5e-2), \
        float(jnp.max(jnp.abs(out_bf16 - ref)))

    print("KERNEL_OK")
</pallas_src>

<mosaic_0001>
module attributes {stable_mosaic.version = 11 : i64} {
  func.func @_matmul_bias_kernel(%arg0: i32, %arg1: i32, %arg2: i32, %arg3: memref<64x128xf32, #tpu.memory_space<vmem>>, %arg4: memref<128x128xf32, #tpu.memory_space<vmem>>, %arg5: memref<1x128xf32, #tpu.memory_space<vmem>>, %arg6: memref<64x128xf32, #tpu.memory_space<vmem>>, %arg7: memref<64x128xf32, #tpu.memory_space<vmem>>) attributes {dimension_semantics = [#tpu.dimension_semantics<parallel>, #tpu.dimension_semantics<parallel>, #tpu.dimension_semantics<arbitrary>], iteration_bounds = array<i64: 1, 1, 1>, scalar_prefetch = 0 : i64, scratch_operands = 1 : i64, tpu.core_type = #tpu.core_type<tc>, window_params = [{transform_indices = @transform_0, window_bounds = array<i64: 64, 128>}, {transform_indices = @transform_1, window_bounds = array<i64: 128, 128>}, {transform_indices = @transform_2, window_bounds = array<i64: 1, 128>}, {transform_indices = @transform_3, window_bounds = array<i64: 64, 128>}]} {
    %c0_i32 = arith.constant 0 : i32
    %0 = arith.cmpi eq, %arg2, %c0_i32 : i32
    %1 = arith.extui %0 : i1 to i32
    %c0_i32_0 = arith.constant 0 : i32
    %2 = arith.cmpi ne, %1, %c0_i32_0 : i32
    scf.if %2 {
      %cst_10 = arith.constant 0.000000e+00 : f32
      %12 = vector.broadcast %cst_10 : f32 to vector<64x128xf32>
      %c0_11 = arith.constant 0 : index
      %c0_12 = arith.constant 0 : index
      %13 = vector.load %arg7[%c0_11, %c0_12] : memref<64x128xf32, #tpu.memory_space<vmem>>, vector<64x128xf32>
      tpu.vector_store %arg7[%c0_11, %c0_12], %12 {strides = array<i32>} : memref<64x128xf32, #tpu.memory_space<vmem>>, vector<64x128xf32>,
    } else {
    }
    %c0 = arith.constant 0 : index
    %c0_1 = arith.constant 0 : index
    %3 = vector.load %arg7[%c0, %c0_1] : memref<64x128xf32, #tpu.memory_space<vmem>>, vector<64x128xf32>
    %c0_2 = arith.constant 0 : index
    %c0_3 = arith.constant 0 : index
    %4 = vector.load %arg3[%c0_2, %c0_3] : memref<64x128xf32, #tpu.memory_space<vmem>>, vector<64x128xf32>
    %c0_4 = arith.constant 0 : index
    %c0_5 = arith.constant 0 : index
    %5 = vector.load %arg4[%c0_4, %c0_5] : memref<128x128xf32, #tpu.memory_space<vmem>>, vector<128x128xf32>
    %cst = arith.constant dense<0.000000e+00> : vector<64x128xf32>
    %6 = tpu.matmul %4, %5, %cst {dimension_numbers = #tpu.dot_dimension_numbers<[1], [0], [0], [1], [0, 0, 1, 1], [], []>} : vector<64x128xf32>, vector<128x128xf32>, vector<64x128xf32> -> vector<64x128xf32>
    %7 = arith.addf %3, %6 : vector<64x128xf32>
    %c0_6 = arith.constant 0 : index
    %c0_7 = arith.constant 0 : index
    %8 = vector.load %arg7[%c0_6, %c0_7] : memref<64x128xf32, #tpu.memory_space<vmem>>, vector<64x128xf32>
    tpu.vector_store %arg7[%c0_6, %c0_7], %7 {strides = array<i32>} : memref<64x128xf32, #tpu.memory_space<vmem>>, vector<64x128xf32>,
    %c0_i32_8 = arith.constant 0 : i32
    %9 = arith.cmpi eq, %arg2, %c0_i32_8 : i32
    %10 = arith.extui %9 : i1 to i32
    %c0_i32_9 = arith.constant 0 : i32
    %11 = arith.cmpi ne, %10, %c0_i32_9 : i32
    scf.if %11 {
      %c0_10 = arith.constant 0 : index
      %c0_11 = arith.constant 0 : index
      %12 = vector.load %arg7[%c0_10, %c0_11] : memref<64x128xf32, #tpu.memory_space<vmem>>, vector<64x128xf32>
      %c0_12 = arith.constant 0 : index
      %c0_13 = arith.constant 0 : index
      %13 = vector.load %arg5[%c0_12, %c0_13] : memref<1x128xf32, #tpu.memory_space<vmem>>, vector<1x128xf32>
      %14 = vector.broadcast %13 : vector<1x128xf32> to vector<64x128xf32>
      %15 = arith.addf %12, %14 : vector<64x128xf32>
      %c0_14 = arith.constant 0 : index
      %c0_15 = arith.constant 0 : index
      %16 = vector.load %arg6[%c0_14, %c0_15] : memref<64x128xf32, #tpu.memory_space<vmem>>, vector<64x128xf32>
      tpu.vector_store %arg6[%c0_14, %c0_15], %15 {strides = array<i32>} : memref<64x128xf32, #tpu.memory_space<vmem>>, vector<64x128xf32>,
    } else {
    }
    return
  }
  func.func @transform_0(%arg0: i32, %arg1: i32, %arg2: i32) -> (i32, i32) {
    %c0_i32 = arith.constant 0 : i32
    return %arg0, %arg2 : i32, i32
  }
  func.func @transform_1(%arg0: i32, %arg1: i32, %arg2: i32) -> (i32, i32) {
    %c0_i32 = arith.constant 0 : i32
    return %arg2, %arg1 : i32, i32
  }
  func.func @transform_2(%arg0: i32, %arg1: i32, %arg2: i32) -> (i32, i32) {
    %c0_i32 = arith.constant 0 : i32
    %c0_i32_0 = arith.constant 0 : i32
    return %c0_i32, %arg1 : i32, i32
  }
  func.func @transform_3(%arg0: i32, %arg1: i32, %arg2: i32) -> (i32, i32) {
    %c0_i32 = arith.constant 0 : i32
    return %arg0, %arg1 : i32, i32
  }
}

</mosaic_0001>

<llo_original>
// kernel: tpu_custom_call.1
$region0: #{tpu_custom_call.1}
  #allocation0 [shape = 'u32[]', space=smem, size = 0x4, offset = 0x4, fixed_abs, tag = 'smem constant byte address 0x4 - core index']
  #allocation1 [shape = 'u32[144,128]{1,0:T(1,128)}', space=vmem, size = 0x12000, scoped, tag = 'internal scratch']
  #allocation2 [shape = 'f32[64,128]{1,0:T(8,128)}', space=vmem, size = 0x8000, scoped, tag = 'scratch operand']
  %s0 = inlined_call_operand.hbm [shape: f32[64,128], index: 0, kind: input, shape index: {}]
  %s1 = inlined_call_operand.hbm [shape: f32[128,128], index: 1, kind: input, shape index: {}]
  %s2 = inlined_call_operand.vmem [shape: f32[1,128], index: 2, kind: input, shape index: {}]
  %s3 = inlined_call_operand.hbm [shape: f32[64,128], index: 3, kind: output, shape index: {}]
  %s4 = sld [smem:[#allocation0]]
  $region38: #{tpu_custom_call.1} parent=0
    _
  %s6 = ssub.s32 1, %s4
  %s7 = scalar_select 0, %s6, %s4
  $region1: #{tpu_custom_call.1} parent=0
    #allocation3 [shape = 'u8[32768]{0}', space=vmem, size = 0x8000, scoped, tag = 'input window, operand 0, single buffered']
    #allocation4 [shape = 's32[1]{0}', space=sflag, size = 0x4, scoped, tag = 'scoped memory for tpu_custom_call.1']
    #allocation5 [shape = 's32[1]{0}', space=sflag, size = 0x4, scoped, tag = 'scoped memory for tpu_custom_call.1']
    #allocation6 [shape = 'u8[65536]{0}', space=vmem, size = 0x10000, scoped, tag = 'input window, operand 1, single buffered']
    #allocation7 [shape = 's32[1]{0}', space=sflag, size = 0x4, scoped, tag = 'scoped memory for tpu_custom_call.1']
    #allocation8 [shape = 'u8[32768]{0}', space=vmem, size = 0x8000, scoped, tag = 'output window, operand 0, single buffered']
    %8 = vsyncpa [#allocation4], 0
    %9 = vsyncpa [#allocation7], 0
    %10 = vsyncpa [#allocation5], 0
    // Predicated region
    $region2: #{tpu_custom_call.1} parent=1 // pred_check
      _
    $region3: #{tpu_custom_call.1} parent=1 // pred_check_branch
      %12 = sbr.rel (0) target = $region5
    $region4: #{tpu_custom_call.1} parent=1 // pred_region
      %s14 = ssub.s32 1024, 1024
      %15 = vsyncadd [#allocation4], %s14
      %s16 = sshll.u32 [#allocation3], 4
      %s17 = int_to_ptr.vmem [resolvable:$true] %s16
      %22 = dma.hbm_to_vmem [thread:$0]  %s0, 1024, %s17, [#allocation4], 128, 128, 8
    $region5: #{tpu_custom_call.1} parent=1 // pred_fallthru
      _
    // Predicated region
    $region6: #{tpu_custom_call.1} parent=1 // pred_check
      _
    $region7: #{tpu_custom_call.1} parent=1 // pred_check_branch
      %24 = sbr.rel (0) target = $region9
    $region8: #{tpu_custom_call.1} parent=1 // pred_region
      %s26 = ssub.s32 2048, 2048
      %27 = vsyncadd [#allocation7], %s26
      %s28 = sshll.u32 [#allocation6], 4
      %s29 = int_to_ptr.vmem [resolvable:$true] %s28
      %34 = dma.hbm_to_vmem [thread:$0]  %s1, 2048, %s29, [#allocation7], 128, 128, 8
    $region9: #{tpu_custom_call.1} parent=1 // pred_fallthru
      _
    // Predicated region
    $region10: #{tpu_custom_call.1} parent=1 // pred_check
      _
    $region11: #{tpu_custom_call.1} parent=1 // pred_check_branch
      %36 = sbr.rel (0) target = $region13
    $region12: #{tpu_custom_call.1} parent=1 // pred_region
      _
    $region13: #{tpu_custom_call.1} parent=1 // pred_fallthru
      _
    // Predicated region
    $region14: #{tpu_custom_call.1} parent=1 // pred_check
      _
    $region15: #{tpu_custom_call.1} parent=1 // pred_check_branch
      %38 = sbr.rel (0) target = $region17
    $region16: #{tpu_custom_call.1} parent=1 // pred_region
      %39 = dma.done [#allocation4], 1024
    $region17: #{tpu_custom_call.1} parent=1 // pred_fallthru
      _
    // Predicated region
    $region18: #{tpu_custom_call.1} parent=1 // pred_check
      _
    $region19: #{tpu_custom_call.1} parent=1 // pred_check_branch
      %41 = sbr.rel (0) target = $region21
    $region20: #{tpu_custom_call.1} parent=1 // pred_region
      %42 = dma.done [#allocation7], 2048
    $region21: #{tpu_custom_call.1} parent=1 // pred_fallthru
      _
    %p43 = scmp.eq.s32.totalorder 0, 0
    // Predicated region
    $region22: #{tpu_custom_call.1} parent=1 // pred_check
      %p44 = pneg %p43
    $region23: #{tpu_custom_call.1} parent=1 // pred_check_branch
      %46 = sbr.rel (%p44) target = $region25
    $region24: #{tpu_custom_call.1} parent=1 // pred_region
      %47 = vst [vmem:[#allocation2] sm:$0xff] 0.0
      %48 = vst [vmem:[#allocation2 + $0x8] sm:$0xff] 0.0
      %49 = vst [vmem:[#allocation2 + $0x10] sm:$0xff] 0.0
      %50 = vst [vmem:[#allocation2 + $0x18] sm:$0xff] 0.0
      %51 = vst [vmem:[#allocation2 + $0x20] sm:$0xff] 0.0
      %52 = vst [vmem:[#allocation2 + $0x28] sm:$0xff] 0.0
      %53 = vst [vmem:[#allocation2 + $0x30] sm:$0xff] 0.0
      %54 = vst [vmem:[#allocation2 + $0x38] sm:$0xff] 0.0
    $region25: #{tpu_custom_call.1} parent=1 // pred_fallthru
      _
    %v55 = vld [vmem:[#allocation2] sm:$0xff]
    %v56 = vld [vmem:[#allocation2 + $0x8] sm:$0xff]
    %v57 = vld [vmem:[#allocation2 + $0x10] sm:$0xff]
    %v58 = vld [vmem:[#allocation2 + $0x18] sm:$0xff]
    %v59 = vld [vmem:[#allocation2 + $0x20] sm:$0xff]
    %v60 = vld [vmem:[#allocation2 + $0x28] sm:$0xff]
    %v61 = vld [vmem:[#allocation2 + $0x30] sm:$0xff]
    %v62 = vld [vmem:[#allocation2 + $0x38] sm:$0xff]
    %v63 = vld [vmem:[#allocation3] sm:$0xff]
    %v64 = vld [vmem:[#allocation3 + $0x8] sm:$0xff]
    %v65 = vld [vmem:[#allocation3 + $0x10] sm:$0xff]
    %v66 = vld [vmem:[#allocation3 + $0x18] sm:$0xff]
    %v67 = vld [vmem:[#allocation3 + $0x20] sm:$0xff]
    %v68 = vld [vmem:[#allocation3 + $0x28] sm:$0xff]
    %v69 = vld [vmem:[#allocation3 + $0x30] sm:$0xff]
    %v70 = vld [vmem:[#allocation3 + $0x38] sm:$0xff]
    %v71 = vld [vmem:[#allocation6] sm:$0xff]
    %v72 = vld [vmem:[#allocation6 + $0x8] sm:$0xff]
    %v73 = vld [vmem:[#allocation6 + $0x10] sm:$0xff]
    %v74 = vld [vmem:[#allocation6 + $0x18] sm:$0xff]
    %v75 = vld [vmem:[#allocation6 + $0x20] sm:$0xff]
    %v76 = vld [vmem:[#allocation6 + $0x28] sm:$0xff]
    %v77 = vld [vmem:[#allocation6 + $0x30] sm:$0xff]
    %v78 = vld [vmem:[#allocation6 + $0x38] sm:$0xff]
    %v79 = vld [vmem:[#allocation6 + $0x40] sm:$0xff]
    %v80 = vld [vmem:[#allocation6 + $0x48] sm:$0xff]
    %v81 = vld [vmem:[#allocation6 + $0x50] sm:$0xff]
    %v82 = vld [vmem:[#allocation6 + $0x58] sm:$0xff]
    %v83 = vld [vmem:[#allocation6 + $0x60] sm:$0xff]
    %v84 = vld [vmem:[#allocation6 + $0x68] sm:$0xff]
    %v85 = vld [vmem:[#allocation6 + $0x70] sm:$0xff]
    %v86 = vld [vmem:[#allocation6 + $0x78] sm:$0xff]
    %87 = vmatprep.subr.mxu0 0.0
    %88 = vmatpush1.msra.mxu0 %v86
    %89 = vmatprep.subr.mxu0 0.0
    %90 = vmatpush1.msra.mxu0 %v85
    %91 = vmatprep.subr.mxu0 0.0
    %92 = vmatpush1.msra.mxu0 %v84
    %93 = vmatprep.subr.mxu0 0.0
    %94 = vmatpush1.msra.mxu0 %v83
    %95 = vmatprep.subr.mxu0 0.0
    %96 = vmatpush1.msra.mxu0 %v82
    %97 = vmatprep.subr.mxu0 0.0
    %98 = vmatpush1.msra.mxu0 %v81
    %99 = vmatprep.subr.mxu0 0.0
    %100 = vmatpush1.msra.mxu0 %v80
    %101 = vmatprep.subr.mxu0 0.0
    %102 = vmatpush1.msra.mxu0 %v79
    %103 = vmatprep.subr.mxu0 0.0
    %104 = vmatpush1.msra.mxu0 %v78
    %105 = vmatprep.subr.mxu0 0.0
    %106 = vmatpush1.msra.mxu0 %v77
    %107 = vmatprep.subr.mxu0 0.0
    %108 = vmatpush1.msra.mxu0 %v76
    %109 = vmatprep.subr.mxu0 0.0
    %110 = vmatpush1.msra.mxu0 %v75
    %111 = vmatprep.subr.mxu0 0.0
    %112 = vmatpush1.msra.mxu0 %v74
    %113 = vmatprep.subr.mxu0 0.0
    %114 = vmatpush1.msra.mxu0 %v73
    %115 = vmatprep.subr.mxu0 0.0
    %116 = vmatpush1.msra.mxu0 %v72
    %117 = vmatprep.subr.mxu0 0.0
    %118 = vmatpush1.msra.mxu0 %v71
    %119 = vmatprep.subr.mxu0 0.0
    %120 = vmatpush2.msra.mxu0 0.0
    %121 = vmatprep.subr.mxu0 0.0
    %122 = vmatpush2.msra.mxu0 0.0
    %123 = vmatprep.subr.mxu0 0.0
    %124 = vmatpush2.msra.mxu0 0.0
    %125 = vmatprep.subr.mxu0 0.0
    %126 = vmatpush2.msra.mxu0 0.0
    %127 = vmatprep.subr.mxu0 0.0
    %128 = vmatpush2.msra.mxu0 0.0
    %129 = vmatprep.subr.mxu0 0.0
    %130 = vmatpush2.msra.mxu0 0.0
    %131 = vmatprep.subr.mxu0 0.0
    %132 = vmatpush2.msra.mxu0 0.0
    %133 = vmatprep.subr.mxu0 0.0
    %134 = vmatpush2.msra.mxu0 0.0
    %135 = vmatprep.subr.mxu0 0.0
    %136 = vmatpush2.msra.mxu0 0.0
    %137 = vmatprep.subr.mxu0 0.0
    %138 = vmatpush2.msra.mxu0 0.0
    %139 = vmatprep.subr.mxu0 0.0
    %140 = vmatpush2.msra.mxu0 0.0
    %141 = vmatprep.subr.mxu0 0.0
    %142 = vmatpush2.msra.mxu0 0.0
    %143 = vmatprep.subr.mxu0 0.0
    %144 = vmatpush2.msra.mxu0 0.0
    %145 = vmatprep.subr.mxu0 0.0
    %146 = vmatpush2.msra.mxu0 0.0
    %147 = vmatprep.subr.mxu0 0.0
    %148 = vmatpush2.msra.mxu0 0.0
    %149 = vmatprep.subr.mxu0 0.0
    %150 = vmatpush2.msra.mxu0 0.0
    %151 = vmatprep.mubr.f32.mxu0 0.0
    %152 = vmatmul.mubr.f32.gmra.mxu0 %v63
    %v153 = vpop.f32.mrf.mxu0
    %v154 = vadd.f32 0.0, %v153
    %v155 = vpop.f32.mrf.mxu0
    %156 = vmatprep.mubr.f32.mxu0 0.0
    %157 = vmatmul.mubr.f32.gmra.mxu0 %v64
    %v158 = vpop.f32.mrf.mxu0
    %v159 = vadd.f32 0.0, %v158
    %v160 = vpop.f32.mrf.mxu0
    %161 = vmatprep.mubr.f32.mxu0 0.0
    %162 = vmatmul.mubr.f32.gmra.mxu0 %v65
    %v163 = vpop.f32.mrf.mxu0
    %v164 = vadd.f32 0.0, %v163
    %v165 = vpop.f32.mrf.mxu0
    %166 = vmatprep.mubr.f32.mxu0 0.0
    %167 = vmatmul.mubr.f32.gmra.mxu0 %v66
    %v168 = vpop.f32.mrf.mxu0
    %v169 = vadd.f32 0.0, %v168
    %v170 = vpop.f32.mrf.mxu0
    %171 = vmatprep.mubr.f32.mxu0 0.0
    %172 = vmatmul.mubr.f32.gmra.mxu0 %v67
    %v173 = vpop.f32.mrf.mxu0
    %v174 = vadd.f32 0.0, %v173
    %v175 = vpop.f32.mrf.mxu0
    %176 = vmatprep.mubr.f32.mxu0 0.0
    %177 = vmatmul.mubr.f32.gmra.mxu0 %v68
    %v178 = vpop.f32.mrf.mxu0
    %v179 = vadd.f32 0.0, %v178
    %v180 = vpop.f32.mrf.mxu0
    %181 = vmatprep.mubr.f32.mxu0 0.0
    %182 = vmatmul.mubr.f32.gmra.mxu0 %v69
    %v183 = vpop.f32.mrf.mxu0
    %v184 = vadd.f32 0.0, %v183
    %v185 = vpop.f32.mrf.mxu0
    %186 = vmatprep.mubr.f32.mxu0 0.0
    %187 = vmatmul.mubr.f32.gmra.mxu0 %v70
    %v188 = vpop.f32.mrf.mxu0
    %v189 = vadd.f32 0.0, %v188
    %v190 = vpop.f32.mrf.mxu0
    %191 = vdwg.mxu0
    %v192 = vadd.f32 %v55, %v154
    %v193 = vadd.f32 %v56, %v159
    %v194 = vadd.f32 %v57, %v164
    %v195 = vadd.f32 %v58, %v169
    %v196 = vadd.f32 %v59, %v174
    %v197 = vadd.f32 %v60, %v179
    %v198 = vadd.f32 %v61, %v184
    %v199 = vadd.f32 %v62, %v189
    %200 = vst [vmem:[#allocation2] sm:$0xff] %v192
    %201 = vst [vmem:[#allocation2 + $0x8] sm:$0xff] %v193
    %202 = vst [vmem:[#allocation2 + $0x10] sm:$0xff] %v194
    %203 = vst [vmem:[#allocation2 + $0x18] sm:$0xff] %v195
    %204 = vst [vmem:[#allocation2 + $0x20] sm:$0xff] %v196
    %205 = vst [vmem:[#allocation2 + $0x28] sm:$0xff] %v197
    %206 = vst [vmem:[#allocation2 + $0x30] sm:$0xff] %v198
    %207 = vst [vmem:[#allocation2 + $0x38] sm:$0xff] %v199
    // Predicated region
    $region26: #{tpu_custom_call.1} parent=1 // pred_check
      %p208 = pneg %p43
    $region27: #{tpu_custom_call.1} parent=1 // pred_check_branch
      %210 = sbr.rel (%p208) target = $region29
    $region28: #{tpu_custom_call.1} parent=1 // pred_region
      %v211 = vld [vmem:[#allocation2] sm:$0xff]
      %v212 = vld [vmem:[#allocation2 + $0x8] sm:$0xff]
      %v213 = vld [vmem:[#allocation2 + $0x10] sm:$0xff]
      %v214 = vld [vmem:[#allocation2 + $0x18] sm:$0xff]
      %v215 = vld [vmem:[#allocation2 + $0x20] sm:$0xff]
      %v216 = vld [vmem:[#allocation2 + $0x28] sm:$0xff]
      %v217 = vld [vmem:[#allocation2 + $0x30] sm:$0xff]
      %v218 = vld [vmem:[#allocation2 + $0x38] sm:$0xff]
      %v219 = vld [vmem:[%s2] sm:$0x1]
      %v221 = vlaneseq
      %v222 = vshrl.u32 %v221, 7
      %v223 = vsub.s32 0, %v222
      %v224 = vrot.slane %v219, %v223
      %v226 = vadd.f32 %v211, %v224
      %v227 = vadd.f32 %v212, %v224
      %v228 = vadd.f32 %v213, %v224
      %v229 = vadd.f32 %v214, %v224
      %v230 = vadd.f32 %v215, %v224
      %v231 = vadd.f32 %v216, %v224
      %v232 = vadd.f32 %v217, %v224
      %v233 = vadd.f32 %v218, %v224
      %234 = vst [vmem:[#allocation8] sm:$0xff] %v226
      %235 = vst [vmem:[#allocation8 + $0x8] sm:$0xff] %v227
      %236 = vst [vmem:[#allocation8 + $0x10] sm:$0xff] %v228
      %237 = vst [vmem:[#allocation8 + $0x18] sm:$0xff] %v229
      %238 = vst [vmem:[#allocation8 + $0x20] sm:$0xff] %v230
      %239 = vst [vmem:[#allocation8 + $0x28] sm:$0xff] %v231
      %240 = vst [vmem:[#allocation8 + $0x30] sm:$0xff] %v232
      %241 = vst [vmem:[#allocation8 + $0x38] sm:$0xff] %v233
    $region29: #{tpu_custom_call.1} parent=1 // pred_fallthru
      _
    // Predicated region
    $region30: #{tpu_custom_call.1} parent=1 // pred_check
      _
    $region31: #{tpu_custom_call.1} parent=1 // pred_check_branch
      %243 = sbr.rel (0) target = $region33
    $region32: #{tpu_custom_call.1} parent=1 // pred_region
      %s245 = ssub.s32 1024, 1024
      %246 = vsyncadd [#allocation5], %s245
      %s247 = sshll.u32 [#allocation8], 4
      %s248 = int_to_ptr.vmem [resolvable:$true] %s247
      %253 = dma.vmem_to_hbm [thread:$0]  %s248, 1024, %s3, [#allocation5], 128, 128, 8
    $region33: #{tpu_custom_call.1} parent=1 // pred_fallthru
      _
    // Predicated region
    $region34: #{tpu_custom_call.1} parent=1 // pred_check
      _
    $region35: #{tpu_custom_call.1} parent=1 // pred_check_branch
      %255 = sbr.rel (0) target = $region37
    $region36: #{tpu_custom_call.1} parent=1 // pred_region
      %256 = dma.done [#allocation5], 1024
    $region37: #{tpu_custom_call.1} parent=1 // pred_fallthru
      _
    %257 = vsyncpa [#allocation4], 1
    %258 = vsyncpa [#allocation7], 1
    %259 = vsyncpa [#allocation5], 1

</llo_original>
